<compile_context>
chip_gen: v5e
topology: v5e:2x2
jax: 0.10.0
libtpu: 0.0.40
codegen_flags: <defaults>
</compile_context>

<pallas_src>
import jax
import jax.numpy as jnp
from jax import lax
from jax.experimental import pallas as pl
from jax.experimental.pallas import tpu as pltpu


def _round_up(v, m):
    return ((v + m - 1) // m) * m


def _tile_and_pad(dim, want, quantum):
    """Pick a legal tile size <= `want` for `dim` and the padded extent.

    If dim <= want we use the full dim as the block (always legal).
    Otherwise the tile is a multiple of `quantum` and the dim is padded up to a
    multiple of the tile (padding is only applied when actually needed).
    """
    want = max(quantum, (want // quantum) * quantum)
    if dim <= want:
        return dim, dim
    if dim % want == 0:
        return want, dim
    return want, _round_up(dim, want)


def snake_alt_kernel(x_ref, w_ref, b_ref, o_ref, acc_ref):
    # x_ref:   (TM, TK)  input tile
    # w_ref:   (TN, TK)  weight tile in PyTorch (out, in) orientation
    # b_ref:   (1, TN)   bias slice
    # o_ref:   (TM, TN)  output tile
    # acc_ref: (TM, TN)  f32 accumulator scratch, resident across the K axis
    k = pl.program_id(2)

    @pl.when(k == 0)
    def _init():
        acc_ref[...] = jnp.zeros_like(acc_ref)

    # x @ w.T on the MXU (contract dim 1 of both operands), f32 accumulation.
    acc_ref[...] += lax.dot_general(
        x_ref[...],
        w_ref[...],
        dimension_numbers=(((1,), (1,)), ((), ())),
        preferred_element_type=jnp.float32,
    )

    @pl.when(k == pl.num_programs(2) - 1)
    def _finalize():
        y = acc_ref[...] + b_ref[...].astype(jnp.float32)  # (1, TN) broadcasts
        s = jnp.sin(y)                                     # EUP, f32
        o_ref[...] = (0.5 * y + s * s).astype(o_ref.dtype)


def snake_alt_layer(x, weight, bias, *, tile_m=256, tile_n=256, tile_k=512,
                    compute_dtype=None, out_dtype=None):
    """Forward pass of SnakeAltLayer.

    x:      (M, IN)   activations
    weight: (OUT, IN) nn.Linear weight (PyTorch convention, NOT transposed)
    bias:   (OUT,)
    compute_dtype: e.g. jnp.bfloat16 to cast x/weight for the MXU (accumulation
                   and activation stay f32).  None = use input dtypes.
    returns (M, OUT) in `out_dtype` (default: x.dtype).
    """
    M, IN = x.shape
    OUT, IN_w = weight.shape
    assert IN == IN_w, "weight must be (out_features, in_features)"
    assert bias.shape == (OUT,)

    if out_dtype is None:
        out_dtype = x.dtype
    if compute_dtype is not None:
        x = x.astype(compute_dtype)
        weight = weight.astype(compute_dtype)

    # Tile selection: M on the sublane axis (quantum 8), N/K lane-dense (128).
    tm, Mp = _tile_and_pad(M, tile_m, 8)
    tn, Np = _tile_and_pad(OUT, tile_n, 128)
    tk, Kp = _tile_and_pad(IN, tile_k, 128)

    # Pad only when needed (zero padding along K contributes nothing to the dot).
    if (Mp, Kp) != (M, IN):
        x = jnp.pad(x, ((0, Mp - M), (0, Kp - IN)))
    if (Np, Kp) != (OUT, IN):
        weight = jnp.pad(weight, ((0, Np - OUT), (0, Kp - IN)))
    if Np != OUT:
        bias = jnp.pad(bias, (0, Np - OUT))
    b2 = bias.reshape(1, Np)

    grid = (Mp // tm, Np // tn, Kp // tk)

    # VMEM budget: double-buffered x / w / b / out tiles + f32 accumulator.
    itx = x.dtype.itemsize
    itw = weight.dtype.itemsize
    itb = b2.dtype.itemsize
    ito = jnp.dtype(out_dtype).itemsize
    vmem_needed = (2 * tm * tk * itx + 2 * tn * tk * itw + 2 * tn * itb
                   + 2 * tm * tn * ito + tm * tn * 4)
    vmem_limit = max(32 * 1024 * 1024, (vmem_needed * 3) // 2 + (2 << 20))

    cost = pl.CostEstimate(
        flops=2 * M * IN * OUT,
        transcendentals=M * OUT,
        bytes_accessed=M * IN * itx + OUT * IN * itw + OUT * itb + M * OUT * ito,
    )

    out = pl.pallas_call(
        snake_alt_kernel,
        out_shape=jax.ShapeDtypeStruct((Mp, Np), out_dtype),
        grid_spec=pltpu.PrefetchScalarGridSpec(
            num_scalar_prefetch=0,
            grid=grid,
            in_specs=[
                pl.BlockSpec((tm, tk), lambda i, j, k: (i, k)),   # x tile
                pl.BlockSpec((tn, tk), lambda i, j, k: (j, k)),   # weight tile (out, in)
                pl.BlockSpec((1, tn), lambda i, j, k: (0, j)),    # bias slice
            ],
            out_specs=pl.BlockSpec((tm, tn), lambda i, j, k: (i, j)),
            scratch_shapes=[pltpu.VMEM((tm, tn), jnp.float32)],
        ),
        compiler_params=pltpu.CompilerParams(
            dimension_semantics=("parallel", "parallel", "arbitrary"),
            vmem_limit_bytes=int(vmem_limit),
        ),
        cost_estimate=cost,
    )(x, weight, b2)

    if (Mp, Np) != (M, OUT):
        out = out[:M, :OUT]
    return out


def _reference(x, weight, bias):
    y = x @ weight.T + bias
    return 0.5 * y + jnp.sin(y) ** 2


if __name__ == "__main__":
    key = jax.random.PRNGKey(0)
    k_x, k_w, k_b, k_x2 = jax.random.split(key, 4)

    batch, in_features, out_features = 16, 64, 128

    # Deterministic parameter init (mirrors the module's __init__):
    #   weight: xavier_normal_ over an (out, in) matrix
    #   bias:   default nn.Linear init U(-1/sqrt(in), 1/sqrt(in))
    xavier_std = (2.0 / (in_features + out_features)) ** 0.5
    weight = xavier_std * jax.random.normal(k_w, (out_features, in_features), jnp.float32)
    bound = 1.0 / (in_features ** 0.5)
    bias = jax.random.uniform(k_b, (out_features,), jnp.float32, -bound, bound)

    x = jax.random.normal(k_x, (batch, in_features), jnp.float32)

    fwd = jax.jit(snake_alt_layer)

    # f32 path (exact vs. reference).
    out = jax.block_until_ready(fwd(x, weight, bias))
    ref = _reference(x, weight, bias)
    assert out.shape == (batch, out_features)
    assert jnp.allclose(out, ref, atol=1e-5, rtol=1e-5), "f32 mismatch vs reference"

    # Ragged batch (exercises the full-dim / non-multiple-of-8-friendly path).
    x2 = jax.random.normal(k_x2, (13, in_features), jnp.float32)
    out2 = jax.block_until_ready(fwd(x2, weight, bias))
    ref2 = _reference(x2, weight, bias)
    assert out2.shape == (13, out_features)
    assert jnp.allclose(out2, ref2, atol=1e-5, rtol=1e-5), "ragged-batch mismatch"

    # bf16 operands, f32 accumulation + activation (v6e/v7x MXU fast path).
    out_bf16 = jax.block_until_ready(
        snake_alt_layer(x, weight, bias, compute_dtype=jnp.bfloat16))
    assert out_bf16.shape == (batch, out_features)
    assert jnp.allclose(out_bf16, ref, atol=3e-2, rtol=3e-2), "bf16 mismatch"

    print("KERNEL_OK")
</pallas_src>

<mosaic_0001>
module attributes {stable_mosaic.version = 11 : i64} {
  func.func @snake_alt_kernel(%arg0: i32, %arg1: i32, %arg2: i32, %arg3: memref<16x64xf32, #tpu.memory_space<vmem>>, %arg4: memref<128x64xf32, #tpu.memory_space<vmem>>, %arg5: memref<1x128xf32, #tpu.memory_space<vmem>>, %arg6: memref<16x128xf32, #tpu.memory_space<vmem>>, %arg7: memref<16x128xf32, #tpu.memory_space<vmem>>) attributes {dimension_semantics = [#tpu.dimension_semantics<parallel>, #tpu.dimension_semantics<parallel>, #tpu.dimension_semantics<arbitrary>], iteration_bounds = array<i64: 1, 1, 1>, scalar_prefetch = 0 : i64, scratch_operands = 1 : i64, tpu.core_type = #tpu.core_type<tc>, window_params = [{transform_indices = @transform_0, window_bounds = array<i64: 16, 64>}, {transform_indices = @transform_1, window_bounds = array<i64: 128, 64>}, {transform_indices = @transform_2, window_bounds = array<i64: 1, 128>}, {transform_indices = @transform_3, window_bounds = array<i64: 16, 128>}]} {
    %c0_i32 = arith.constant 0 : i32
    %0 = arith.cmpi eq, %arg2, %c0_i32 : i32
    %1 = arith.extui %0 : i1 to i32
    %c0_i32_0 = arith.constant 0 : i32
    %2 = arith.cmpi ne, %1, %c0_i32_0 : i32
    scf.if %2 {
      %cst_10 = arith.constant 0.000000e+00 : f32
      %12 = vector.broadcast %cst_10 : f32 to vector<16x128xf32>
      %c0_11 = arith.constant 0 : index
      %c0_12 = arith.constant 0 : index
      %13 = vector.load %arg7[%c0_11, %c0_12] : memref<16x128xf32, #tpu.memory_space<vmem>>, vector<16x128xf32>
      tpu.vector_store %arg7[%c0_11, %c0_12], %12 {strides = array<i32>} : memref<16x128xf32, #tpu.memory_space<vmem>>, vector<16x128xf32>,
    } else {
    }
    %c0 = arith.constant 0 : index
    %c0_1 = arith.constant 0 : index
    %3 = vector.load %arg7[%c0, %c0_1] : memref<16x128xf32, #tpu.memory_space<vmem>>, vector<16x128xf32>
    %c0_2 = arith.constant 0 : index
    %c0_3 = arith.constant 0 : index
    %4 = vector.load %arg3[%c0_2, %c0_3] : memref<16x64xf32, #tpu.memory_space<vmem>>, vector<16x64xf32>
    %c0_4 = arith.constant 0 : index
    %c0_5 = arith.constant 0 : index
    %5 = vector.load %arg4[%c0_4, %c0_5] : memref<128x64xf32, #tpu.memory_space<vmem>>, vector<128x64xf32>
    %cst = arith.constant dense<0.000000e+00> : vector<16x128xf32>
    %6 = tpu.matmul %4, %5, %cst {dimension_numbers = #tpu.dot_dimension_numbers<[1], [1], [0], [0], [0, 0, 1, 0], [], []>} : vector<16x64xf32>, vector<128x64xf32>, vector<16x128xf32> -> vector<16x128xf32>
    %7 = arith.addf %3, %6 : vector<16x128xf32>
    %c0_6 = arith.constant 0 : index
    %c0_7 = arith.constant 0 : index
    %8 = vector.load %arg7[%c0_6, %c0_7] : memref<16x128xf32, #tpu.memory_space<vmem>>, vector<16x128xf32>
    tpu.vector_store %arg7[%c0_6, %c0_7], %7 {strides = array<i32>} : memref<16x128xf32, #tpu.memory_space<vmem>>, vector<16x128xf32>,
    %c0_i32_8 = arith.constant 0 : i32
    %9 = arith.cmpi eq, %arg2, %c0_i32_8 : i32
    %10 = arith.extui %9 : i1 to i32
    %c0_i32_9 = arith.constant 0 : i32
    %11 = arith.cmpi ne, %10, %c0_i32_9 : i32
    scf.if %11 {
      %c0_10 = arith.constant 0 : index
      %c0_11 = arith.constant 0 : index
      %12 = vector.load %arg7[%c0_10, %c0_11] : memref<16x128xf32, #tpu.memory_space<vmem>>, vector<16x128xf32>
      %c0_12 = arith.constant 0 : index
      %c0_13 = arith.constant 0 : index
      %13 = vector.load %arg5[%c0_12, %c0_13] : memref<1x128xf32, #tpu.memory_space<vmem>>, vector<1x128xf32>
      %14 = vector.broadcast %13 : vector<1x128xf32> to vector<16x128xf32>
      %15 = arith.addf %12, %14 : vector<16x128xf32>
      %16 = math.sin %15 : vector<16x128xf32>
      %cst_14 = arith.constant 5.000000e-01 : f32
      %17 = vector.broadcast %cst_14 : f32 to vector<16x128xf32>
      %18 = arith.mulf %17, %15 : vector<16x128xf32>
      %19 = arith.mulf %16, %16 : vector<16x128xf32>
      %20 = arith.addf %18, %19 : vector<16x128xf32>
      %c0_15 = arith.constant 0 : index
      %c0_16 = arith.constant 0 : index
      %21 = vector.load %arg6[%c0_15, %c0_16] : memref<16x128xf32, #tpu.memory_space<vmem>>, vector<16x128xf32>
      tpu.vector_store %arg6[%c0_15, %c0_16], %20 {strides = array<i32>} : memref<16x128xf32, #tpu.memory_space<vmem>>, vector<16x128xf32>,
    } else {
    }
    return
  }
  func.func @transform_0(%arg0: i32, %arg1: i32, %arg2: i32) -> (i32, i32) {
    %c0_i32 = arith.constant 0 : i32
    return %arg0, %arg2 : i32, i32
  }
  func.func @transform_1(%arg0: i32, %arg1: i32, %arg2: i32) -> (i32, i32) {
    %c0_i32 = arith.constant 0 : i32
    return %arg1, %arg2 : i32, i32
  }
  func.func @transform_2(%arg0: i32, %arg1: i32, %arg2: i32) -> (i32, i32) {
    %c0_i32 = arith.constant 0 : i32
    %c0_i32_0 = arith.constant 0 : i32
    return %c0_i32, %arg1 : i32, i32
  }
  func.func @transform_3(%arg0: i32, %arg1: i32, %arg2: i32) -> (i32, i32) {
    %c0_i32 = arith.constant 0 : i32
    return %arg0, %arg1 : i32, i32
  }
}

</mosaic_0001>

<llo_original>
// kernel: snake_alt_layer.1
$region0: #{snake_alt_layer.1}
  #allocation0 [shape = 'u32[]', space=smem, size = 0x4, offset = 0x4, fixed_abs, tag = 'smem constant byte address 0x4 - core index']
  #allocation1 [shape = 'u32[72,128]{1,0:T(1,128)}', space=vmem, size = 0x9000, scoped, tag = 'internal scratch']
  #allocation2 [shape = 'f32[16,128]{1,0:T(8,128)}', space=vmem, size = 0x2000, scoped, tag = 'scratch operand']
  %s0 = inlined_call_operand.vmem [shape: f32[16,64], index: 0, kind: input, shape index: {}]
  %s1 = inlined_call_operand.vmem [shape: f32[128,64], index: 1, kind: input, shape index: {}]
  %s2 = inlined_call_operand.vmem [shape: f32[1,128], index: 2, kind: input, shape index: {}]
  %s3 = inlined_call_operand.hbm [shape: f32[16,128], index: 3, kind: output, shape index: {}]
  %s4 = sld [smem:[#allocation0]]
  $region30: #{snake_alt_layer.1} parent=0
    _
  %s6 = ssub.s32 1, %s4
  %s7 = scalar_select 0, %s6, %s4
  $region1: #{snake_alt_layer.1} parent=0
    #allocation3 [shape = 'u8[8192]{0}', space=vmem, size = 0x2000, scoped, tag = 'output window, operand 0, single buffered']
    #allocation4 [shape = 's32[1]{0}', space=sflag, size = 0x4, scoped, tag = 'scoped memory for snake_alt_layer.1']
    %8 = vsyncpa [#allocation4], 0
    // Predicated region
    $region2: #{snake_alt_layer.1} parent=1 // pred_check
      _
    $region3: #{snake_alt_layer.1} parent=1 // pred_check_branch
      %10 = sbr.rel (0) target = $region5
    $region4: #{snake_alt_layer.1} parent=1 // pred_region
      _
    $region5: #{snake_alt_layer.1} parent=1 // pred_fallthru
      _
    // Predicated region
    $region6: #{snake_alt_layer.1} parent=1 // pred_check
      _
    $region7: #{snake_alt_layer.1} parent=1 // pred_check_branch
      %12 = sbr.rel (0) target = $region9
    $region8: #{snake_alt_layer.1} parent=1 // pred_region
      _
    $region9: #{snake_alt_layer.1} parent=1 // pred_fallthru
      _
    // Predicated region
    $region10: #{snake_alt_layer.1} parent=1 // pred_check
      _
    $region11: #{snake_alt_layer.1} parent=1 // pred_check_branch
      %14 = sbr.rel (0) target = $region13
    $region12: #{snake_alt_layer.1} parent=1 // pred_region
      _
    $region13: #{snake_alt_layer.1} parent=1 // pred_fallthru
      _
    %p15 = scmp.eq.s32.totalorder 0, 0
    // Predicated region
    $region14: #{snake_alt_layer.1} parent=1 // pred_check
      %p16 = pneg %p15
    $region15: #{snake_alt_layer.1} parent=1 // pred_check_branch
      %18 = sbr.rel (%p16) target = $region17
    $region16: #{snake_alt_layer.1} parent=1 // pred_region
      %19 = vst [vmem:[#allocation2] sm:$0xff] 0.0
      %20 = vst [vmem:[#allocation2 + $0x8] sm:$0xff] 0.0
    $region17: #{snake_alt_layer.1} parent=1 // pred_fallthru
      _
    %v21 = vld [vmem:[#allocation2] sm:$0xff]
    %v22 = vld [vmem:[#allocation2 + $0x8] sm:$0xff]
    %v23 = vld [vmem:[%s0] sm:$0xff]
    %v24 = vld [vmem:[%s0 + $0x8] sm:$0xff]
    %v25 = vld [vmem:[%s1] sm:$0xff]
    %v26 = vld [vmem:[%s1 + $0x8] sm:$0xff]
    %v27 = vld [vmem:[%s1 + $0x10] sm:$0xff]
    %v28 = vld [vmem:[%s1 + $0x18] sm:$0xff]
    %v29 = vld [vmem:[%s1 + $0x20] sm:$0xff]
    %v30 = vld [vmem:[%s1 + $0x28] sm:$0xff]
    %v31 = vld [vmem:[%s1 + $0x30] sm:$0xff]
    %v32 = vld [vmem:[%s1 + $0x38] sm:$0xff]
    %v33 = vld [vmem:[%s1 + $0x40] sm:$0xff]
    %v34 = vld [vmem:[%s1 + $0x48] sm:$0xff]
    %v35 = vld [vmem:[%s1 + $0x50] sm:$0xff]
    %v36 = vld [vmem:[%s1 + $0x58] sm:$0xff]
    %v37 = vld [vmem:[%s1 + $0x60] sm:$0xff]
    %v38 = vld [vmem:[%s1 + $0x68] sm:$0xff]
    %v39 = vld [vmem:[%s1 + $0x70] sm:$0xff]
    %v40 = vld [vmem:[%s1 + $0x78] sm:$0xff]
    %vm41 = vcmask 523264
    %v43 = vsel %vm41, %v23, 0
    %v46 = vsel %vm41, %v24, 0
    %v49 = vsel %vm41, %v25, 0
    %v52 = vsel %vm41, %v26, 0
    %v55 = vsel %vm41, %v27, 0
    %v58 = vsel %vm41, %v28, 0
    %v61 = vsel %vm41, %v29, 0
    %v64 = vsel %vm41, %v30, 0
    %v67 = vsel %vm41, %v31, 0
    %v70 = vsel %vm41, %v32, 0
    %v73 = vsel %vm41, %v33, 0
    %v76 = vsel %vm41, %v34, 0
    %v79 = vsel %vm41, %v35, 0
    %v82 = vsel %vm41, %v36, 0
    %v85 = vsel %vm41, %v37, 0
    %v88 = vsel %vm41, %v38, 0
    %v91 = vsel %vm41, %v39, 0
    %v94 = vsel %vm41, %v40, 0
    %96 = vmatpush.xpose.msra.mxu0 %v94
    %97 = vmatpush.xpose.msra.mxu0 %v91
    %98 = vmatpush.xpose.msra.mxu0 %v88
    %99 = vmatpush.xpose.msra.mxu0 %v85
    %100 = vmatpush.xpose.msra.mxu0 %v82
    %101 = vmatpush.xpose.msra.mxu0 %v79
    %102 = vmatpush.xpose.msra.mxu0 %v76
    %103 = vmatpush.xpose.msra.mxu0 %v73
    %104 = vmatpush.xpose.msra.mxu0 %v70
    %105 = vmatpush.xpose.msra.mxu0 %v67
    %106 = vmatpush.xpose.msra.mxu0 %v64
    %107 = vmatpush.xpose.msra.mxu0 %v61
    %108 = vmatpush.xpose.msra.mxu0 %v58
    %109 = vmatpush.xpose.msra.mxu0 %v55
    %110 = vmatpush.xpose.msra.mxu0 %v52
    %111 = vmatpush.xpose.msra.mxu0 %v49
    %112 = vmatmul.f32.gmra.mxu0 %v43
    %v113 = vpop.f32.mrf.mxu0
    %v114 = vadd.f32 0.0, %v113
    %115 = vmatmul.f32.gmra.mxu0 %v46
    %v116 = vpop.f32.mrf.mxu0
    %v117 = vadd.f32 0.0, %v116
    %118 = vdwg.mxu0
    %v119 = vadd.f32 %v21, %v114
    %v120 = vadd.f32 %v22, %v117
    %121 = vst [vmem:[#allocation2] sm:$0xff] %v119
    %122 = vst [vmem:[#allocation2 + $0x8] sm:$0xff] %v120
    // Predicated region
    $region18: #{snake_alt_layer.1} parent=1 // pred_check
      %p123 = pneg %p15
    $region19: #{snake_alt_layer.1} parent=1 // pred_check_branch
      %125 = sbr.rel (%p123) target = $region21
    $region20: #{snake_alt_layer.1} parent=1 // pred_region
      %v126 = vld [vmem:[#allocation2] sm:$0xff]
      %v127 = vld [vmem:[#allocation2 + $0x8] sm:$0xff]
      %v128 = vld [vmem:[%s2] sm:$0x1]
      %v130 = vperm.slane %v128, 0
      %v132 = vadd.f32 %v126, %v130
      %v133 = vadd.f32 %v127, %v130
      %v134 = vand.u32 2147483647, %v132
      %vm135 = vcmp.le.f32.partialorder %v134, 0.7853982
      %vm136 = vcmp.lt.s32.totalorder %v132, 0
      %v137 = vand.u32 %v132, 2139095040
      %v138 = vshrl.u32 %v137, 23
      %v139 = vsub.s32 %v138, 127
      %v140 = vand.u32 2147483647, %v132
      %v141 = vand.u32 %v140, 8388607
      %v142 = vor.u32 %v141, 8388608
      %v143 = vsub.s32 0, %v142
      %v144 = vadd.s32 %v139, 1
      %vm145 = vcmp.gt.s32.totalorder %v144, 0
      %v146 = vsel %vm145, %v144, 0
      %v147 = vshrl.u32 %v146, 5
      %v148 = vand.u32 %v146, 31
      %v149 = vsub.s32 32, %v148
      %v150 = vshrl.u32 683565275, %v149
      %v151 = vshll.u32 683565275, %v148
      %v152 = vshrl.u32 2475754826, %v149
      %v153 = vor.u32 %v151, %v152
      %v154 = vshll.u32 2475754826, %v148
      %v155 = vshrl.u32 2131351028, %v149
      %v156 = vor.u32 %v154, %v155
      %v157 = vshll.u32 2131351028, %v148
      %v158 = vshrl.u32 2102212464, %v149
      %v159 = vor.u32 %v157, %v158
      %v160 = vshll.u32 2102212464, %v148
      %v161 = vshrl.u32 920167782, %v149
      %v162 = vor.u32 %v160, %v161
      %v163 = vshll.u32 920167782, %v148
      %v164 = vshrl.u32 1326507024, %v149
      %v165 = vor.u32 %v163, %v164
      %vm166 = vcmp.lt.s32.totalorder %v147, 1
      %vm167 = vcmp.lt.s32.totalorder %v147, 2
      %vm168 = vcmp.lt.s32.totalorder %v147, 3
      %vm169 = vcmp.lt.s32.totalorder %v147, 4
      %v170 = vsel %vm166, %v150, %v153
      %v171 = vsel %vm169, %v159, 2102212464
      %v172 = vsel %vm168, %v156, %v171
      %v173 = vsel %vm167, %v170, %v172
      %v174 = vsel %vm166, %v153, %v156
      %v175 = vsel %vm169, %v162, 920167782
      %v176 = vsel %vm168, %v159, %v175
      %v177 = vsel %vm167, %v174, %v176
      %v178 = vsel %vm166, %v156, %v159
      %v179 = vsel %vm169, %v165, 1326507024
      %v180 = vsel %vm168, %v162, %v179
      %v181 = vsel %vm167, %v178, %v180
      %v182 = vshll.u32 %v142, 8
      %v183 = vand.u32 %v182, 65535
      %v184 = vshrl.u32 %v182, 16
      %v185 = vand.u32 %v181, 65535
      %v186 = vshrl.u32 %v181, 16
      %v187 = vmul.u32 %v183, %v185
      %v188 = vmul.u32 %v183, %v186
      %v189 = vmul.u32 %v184, %v185
      %v190 = vmul.u32 %v184, %v186
      %v191 = vshll.u32 %v188, 16
      %v192 = vshrl.u32 %v188, 16
      %v193 = vshll.u32 %v189, 16
      %v194 = vshrl.u32 %v189, 16
      %vm195 = vc.u32 %v187, %v191
      %v196 = vsel %vm195, 1, 0
      %v197 = vadd.s32 %v187, %v191
      %v198 = vadd.s32 %v190, %v196
      %vm199 = vc.u32 %v197, %v193
      %v200 = vsel %vm199, 1, 0
      %v201 = vadd.s32 %v197, %v193
      %v202 = vadd.s32 %v198, %v200
      %v203 = vadd.s32 %v202, %v192
      %v204 = vadd.s32 %v203, %v194
      %v205 = vand.u32 %v182, 65535
      %v206 = vshrl.u32 %v182, 16
      %v207 = vand.u32 %v177, 65535
      %v208 = vshrl.u32 %v177, 16
      %v209 = vmul.u32 %v205, %v207
      %v210 = vmul.u32 %v205, %v208
      %v211 = vmul.u32 %v206, %v207
      %v212 = vmul.u32 %v206, %v208
      %v213 = vshll.u32 %v210, 16
      %v214 = vshrl.u32 %v210, 16
      %v215 = vshll.u32 %v211, 16
      %v216 = vshrl.u32 %v211, 16
      %vm217 = vc.u32 %v209, %v213
      %v218 = vsel %vm217, 1, 0
      %v219 = vadd.s32 %v209, %v213
      %v220 = vadd.s32 %v212, %v218
      %vm221 = vc.u32 %v219, %v215
      %v222 = vsel %vm221, 1, 0
      %v223 = vadd.s32 %v219, %v215
      %v224 = vadd.s32 %v220, %v222
      %v225 = vadd.s32 %v224, %v214
      %v226 = vadd.s32 %v225, %v216
      %v227 = vmul.u32 %v182, %v173
      %v228 = vadd.s32 %v204, %v223
      %vm229 = vc.u32 %v204, %v223
      %v230 = vadd.s32 %v226, 1
      %v231 = vsel %vm229, %v230, %v226
      %v232 = vadd.s32 %v227, %v231
      %v233 = vadd.s32 %v232, 536870912
      %v234 = vshrl.u32 %v233, 30
      %v235 = vshll.u32 %v234, 30
      %v236 = vsub.s32 %v232, %v235
      %vm237 = vcmp.lt.s32.totalorder %v236, 0
      %v238 = vsub.s32 0, %v236
      %v239 = vsel %vm237, %v238, %v236
      %v240 = vclz %v239
      %v241 = vsub.s32 %v240, 2
      %vm242 = vcmp.gt.s32.totalorder 0, %v241
      %v243 = vsel %vm242, 0, %v241
      %v244 = vsub.s32 32, %v243
      %v245 = vshll.u32 %v236, %v243
      %v246 = vshrl.u32 %v228, %v244
      %v247 = vor.u32 %v245, %v246
      %v248 = vsub.s32 4294967266, %v243
      %v249 = vadd.s32 %v248, 127
      %v250 = vshll.u32 %v249, 23
      %v251 = vor.u32 4788187, %v250
      %v252 = vand.u32 2147483647, %v251
      %v254 = vcvt.s32.f32 %v247
      %v255 = vmul.f32 %v254, %v252
      %v256 = vxor.u32 %v255, 2147483648
      %v257 = vsel %vm136, %v256, %v255
      %v258 = vsub.s32 4, %v234
      %v259 = vsel %vm136, %v258, %v234
      %v260 = vsel %vm135, %v132, %v257
      %v261 = vsel %vm135, 0, %v259
      %v262 = vmul.f32 %v260, %v260
      %v263 = vmul.f32 %v262, -0.001358992
      %v264 = vadd.f32 %v263, 0.041655596
      %v265 = vmul.f32 %v262, %v264
      %v266 = vadd.f32 %v265, -0.4999988
      %v267 = vmul.f32 %v262, %v266
      %v268 = vadd.f32 1.0, %v267
      %v269 = vmul.f32 %v260, %v260
      %v270 = vmul.f32 %v269, -0.00019511016
      %v271 = vadd.f32 %v270, 0.008332121
      %v272 = vmul.f32 %v269, %v271
      %v273 = vadd.f32 %v272, -0.16666654
      %v274 = vmul.f32 %v269, %v273
      %v275 = vadd.f32 %v274, 1.0
      %v276 = vmul.f32 %v275, %v260
      %vm277 = vweird.f32 %v132
      %v278 = vadd.s32 %v261, 3
      %v279 = vand.u32 %v278, 3
      %vm280 = vcmp.lt.s32.totalorder %v279, 2
      %vm281 = vcmp.eq.s32.totalorder %v279, 0
      %v282 = vxor.u32 %v276, 2147483648
      %v283 = vsel %vm281, %v268, %v282
      %vm284 = vcmp.eq.s32.totalorder %v279, 2
      %v285 = vxor.u32 %v268, 2147483648
      %v286 = vsel %vm284, %v285, %v276
      %v287 = vsel %vm280, %v283, %v286
      %v288 = vsel %vm277, nan, %v287
      %v289 = vand.u32 2147483647, %v133
      %vm290 = vcmp.le.f32.partialorder %v289, 0.7853982
      %vm291 = vcmp.lt.s32.totalorder %v133, 0
      %v292 = vand.u32 %v133, 2139095040
      %v293 = vshrl.u32 %v292, 23
      %v294 = vsub.s32 %v293, 127
      %v295 = vand.u32 2147483647, %v133
      %v296 = vand.u32 %v295, 8388607
      %v297 = vor.u32 %v296, 8388608
      %v298 = vsub.s32 0, %v297
      %v299 = vadd.s32 %v294, 1
      %vm300 = vcmp.gt.s32.totalorder %v299, 0
      %v301 = vsel %vm300, %v299, 0
      %v302 = vshrl.u32 %v301, 5
      %v303 = vand.u32 %v301, 31
      %v304 = vsub.s32 32, %v303
      %v305 = vshrl.u32 683565275, %v304
      %v306 = vshll.u32 683565275, %v303
      %v307 = vshrl.u32 2475754826, %v304
      %v308 = vor.u32 %v306, %v307
      %v309 = vshll.u32 2475754826, %v303
      %v310 = vshrl.u32 2131351028, %v304
      %v311 = vor.u32 %v309, %v310
      %v312 = vshll.u32 2131351028, %v303
      %v313 = vshrl.u32 2102212464, %v304
      %v314 = vor.u32 %v312, %v313
      %v315 = vshll.u32 2102212464, %v303
      %v316 = vshrl.u32 920167782, %v304
      %v317 = vor.u32 %v315, %v316
      %v318 = vshll.u32 920167782, %v303
      %v319 = vshrl.u32 1326507024, %v304
      %v320 = vor.u32 %v318, %v319
      %vm321 = vcmp.lt.s32.totalorder %v302, 1
      %vm322 = vcmp.lt.s32.totalorder %v302, 2
      %vm323 = vcmp.lt.s32.totalorder %v302, 3
      %vm324 = vcmp.lt.s32.totalorder %v302, 4
      %v325 = vsel %vm321, %v305, %v308
      %v326 = vsel %vm324, %v314, 2102212464
      %v327 = vsel %vm323, %v311, %v326
      %v328 = vsel %vm322, %v325, %v327
      %v329 = vsel %vm321, %v308, %v311
      %v330 = vsel %vm324, %v317, 920167782
      %v331 = vsel %vm323, %v314, %v330
      %v332 = vsel %vm322, %v329, %v331
      %v333 = vsel %vm321, %v311, %v314
      %v334 = vsel %vm324, %v320, 1326507024
      %v335 = vsel %vm323, %v317, %v334
      %v336 = vsel %vm322, %v333, %v335
      %v337 = vshll.u32 %v297, 8
      %v338 = vand.u32 %v337, 65535
      %v339 = vshrl.u32 %v337, 16
      %v340 = vand.u32 %v336, 65535
      %v341 = vshrl.u32 %v336, 16
      %v342 = vmul.u32 %v338, %v340
      %v343 = vmul.u32 %v338, %v341
      %v344 = vmul.u32 %v339, %v340
      %v345 = vmul.u32 %v339, %v341
      %v346 = vshll.u32 %v343, 16
      %v347 = vshrl.u32 %v343, 16
      %v348 = vshll.u32 %v344, 16
      %v349 = vshrl.u32 %v344, 16
      %vm350 = vc.u32 %v342, %v346
      %v351 = vsel %vm350, 1, 0
      %v352 = vadd.s32 %v342, %v346
      %v353 = vadd.s32 %v345, %v351
      %vm354 = vc.u32 %v352, %v348
      %v355 = vsel %vm354, 1, 0
      %v356 = vadd.s32 %v352, %v348
      %v357 = vadd.s32 %v353, %v355
      %v358 = vadd.s32 %v357, %v347
      %v359 = vadd.s32 %v358, %v349
      %v360 = vand.u32 %v337, 65535
      %v361 = vshrl.u32 %v337, 16
      %v362 = vand.u32 %v332, 65535
      %v363 = vshrl.u32 %v332, 16
      %v364 = vmul.u32 %v360, %v362
      %v365 = vmul.u32 %v360, %v363
      %v366 = vmul.u32 %v361, %v362
      %v367 = vmul.u32 %v361, %v363
      %v368 = vshll.u32 %v365, 16
      %v369 = vshrl.u32 %v365, 16
      %v370 = vshll.u32 %v366, 16
      %v371 = vshrl.u32 %v366, 16
      %vm372 = vc.u32 %v364, %v368
      %v373 = vsel %vm372, 1, 0
      %v374 = vadd.s32 %v364, %v368
      %v375 = vadd.s32 %v367, %v373
      %vm376 = vc.u32 %v374, %v370
      %v377 = vsel %vm376, 1, 0
      %v378 = vadd.s32 %v374, %v370
      %v379 = vadd.s32 %v375, %v377
      %v380 = vadd.s32 %v379, %v369
      %v381 = vadd.s32 %v380, %v371
      %v382 = vmul.u32 %v337, %v328
      %v383 = vadd.s32 %v359, %v378
      %vm384 = vc.u32 %v359, %v378
      %v385 = vadd.s32 %v381, 1
      %v386 = vsel %vm384, %v385, %v381
      %v387 = vadd.s32 %v382, %v386
      %v388 = vadd.s32 %v387, 536870912
      %v389 = vshrl.u32 %v388, 30
      %v390 = vshll.u32 %v389, 30
      %v391 = vsub.s32 %v387, %v390
      %vm392 = vcmp.lt.s32.totalorder %v391, 0
      %v393 = vsub.s32 0, %v391
      %v394 = vsel %vm392, %v393, %v391
      %v395 = vclz %v394
      %v396 = vsub.s32 %v395, 2
      %vm397 = vcmp.gt.s32.totalorder 0, %v396
      %v398 = vsel %vm397, 0, %v396
      %v399 = vsub.s32 32, %v398
      %v400 = vshll.u32 %v391, %v398
      %v401 = vshrl.u32 %v383, %v399
      %v402 = vor.u32 %v400, %v401
      %v403 = vsub.s32 4294967266, %v398
      %v404 = vadd.s32 %v403, 127
      %v405 = vshll.u32 %v404, 23
      %v406 = vor.u32 4788187, %v405
      %v407 = vand.u32 2147483647, %v406
      %v409 = vcvt.s32.f32 %v402
      %v410 = vmul.f32 %v409, %v407
      %v411 = vxor.u32 %v410, 2147483648
      %v412 = vsel %vm291, %v411, %v410
      %v413 = vsub.s32 4, %v389
      %v414 = vsel %vm291, %v413, %v389
      %v415 = vsel %vm290, %v133, %v412
      %v416 = vsel %vm290, 0, %v414
      %v417 = vmul.f32 %v415, %v415
      %v418 = vmul.f32 %v417, -0.001358992
      %v419 = vadd.f32 %v418, 0.041655596
      %v420 = vmul.f32 %v417, %v419
      %v421 = vadd.f32 %v420, -0.4999988
      %v422 = vmul.f32 %v417, %v421
      %v423 = vadd.f32 1.0, %v422
      %v424 = vmul.f32 %v415, %v415
      %v425 = vmul.f32 %v424, -0.00019511016
      %v426 = vadd.f32 %v425, 0.008332121
      %v427 = vmul.f32 %v424, %v426
      %v428 = vadd.f32 %v427, -0.16666654
      %v429 = vmul.f32 %v424, %v428
      %v430 = vadd.f32 %v429, 1.0
      %v431 = vmul.f32 %v430, %v415
      %vm432 = vweird.f32 %v133
      %v433 = vadd.s32 %v416, 3
      %v434 = vand.u32 %v433, 3
      %vm435 = vcmp.lt.s32.totalorder %v434, 2
      %vm436 = vcmp.eq.s32.totalorder %v434, 0
      %v437 = vxor.u32 %v431, 2147483648
      %v438 = vsel %vm436, %v423, %v437
      %vm439 = vcmp.eq.s32.totalorder %v434, 2
      %v440 = vxor.u32 %v423, 2147483648
      %v441 = vsel %vm439, %v440, %v431
      %v442 = vsel %vm435, %v438, %v441
      %v443 = vsel %vm432, nan, %v442
      %v444 = vmul.f32 %v132, 0.5
      %v445 = vmul.f32 %v133, 0.5
      %v446 = vmul.f32 %v288, %v288
      %v447 = vmul.f32 %v443, %v443
      %v448 = vadd.f32 %v444, %v446
      %v449 = vadd.f32 %v445, %v447
      %450 = vst [vmem:[#allocation3] sm:$0xff] %v448
      %451 = vst [vmem:[#allocation3 + $0x8] sm:$0xff] %v449
    $region21: #{snake_alt_layer.1} parent=1 // pred_fallthru
      _
    // Predicated region
    $region22: #{snake_alt_layer.1} parent=1 // pred_check
      _
    $region23: #{snake_alt_layer.1} parent=1 // pred_check_branch
      %453 = sbr.rel (0) target = $region25
    $region24: #{snake_alt_layer.1} parent=1 // pred_region
      %455 = vsyncadd [#allocation4], 0
      %s456 = sshll.u32 [#allocation3], 4
      %s457 = int_to_ptr.vmem [resolvable:$true] %s456
      %s458 = sshll.u32 %s3, 4
      %s459 = int_to_ptr.hbm [resolvable:$true] %s458
      %464 = dma.vmem_to_hbm [thread:$0]  %s457, 256, %s459, [#allocation4], 128, 128, 8
    $region25: #{snake_alt_layer.1} parent=1 // pred_fallthru
      _
    // Predicated region
    $region26: #{snake_alt_layer.1} parent=1 // pred_check
      _
    $region27: #{snake_alt_layer.1} parent=1 // pred_check_branch
      %466 = sbr.rel (0) target = $region29
    $region28: #{snake_alt_layer.1} parent=1 // pred_region
      %468 = dma.done [#allocation4], 256
    $region29: #{snake_alt_layer.1} parent=1 // pred_fallthru
      _
    %469 = vsyncpa [#allocation4], 1

</llo_original>
